<compile_context>
chip_gen: v7x
topology: tpu7x:2x2x1
jax: 0.10.0
libtpu: 0.0.40
codegen_flags: <defaults>
</compile_context>

<pallas_src>
import jax
import jax.numpy as jnp
from jax.experimental import pallas as pl
from jax.experimental.pallas import tpu as pltpu

HIDDEN_PAD = 128  # lane-aligned padding of the 100-wide hidden dim


def mlp_softmax_kernel(x_ref, w1_ref, b1_ref, w2_ref, b2_ref, prob_ref):
    """Two Linear+ReLU layers followed by softmax(dim=1) on one batch tile."""
    x = x_ref[...].astype(jnp.bfloat16)                               # (TB, 512) bf16
    # Layer 1: Linear(512, 128-padded) + ReLU  (bf16 MXU matmul, f32 accumulate)
    h = jnp.dot(x, w1_ref[...], preferred_element_type=jnp.float32) + b1_ref[...]
    h = jnp.maximum(h, 0.0)                                           # (TB, 128) f32
    # Layer 2: Linear(128-padded, 10) + ReLU
    logits = jnp.dot(h.astype(jnp.bfloat16), w2_ref[...],
                     preferred_element_type=jnp.float32) + b2_ref[...]
    logits = jnp.maximum(logits, 0.0)                                 # (TB, 10) f32
    # Softmax along dim=1 (numerically stable, f32); approx reciprocal -> EUP slot.
    m = jnp.max(logits, axis=1, keepdims=True)
    e = jnp.exp(logits - m)
    denom = jnp.sum(e, axis=1, keepdims=True)
    prob_ref[...] = (e * pl.reciprocal(denom, approx=True)).astype(prob_ref.dtype)


def prepare_params(w1, b1, w2, b2):
    """One-time weight prep (hoisted out of the hot path): pad hidden 100->128 and
    cast matmul weights to bf16. Padding is exact: ReLU of zero columns stays 0 and
    zero rows of w2 contribute nothing."""
    d_in, hidden = w1.shape
    d_out = w2.shape[1]
    w1p = jnp.zeros((d_in, HIDDEN_PAD), jnp.bfloat16).at[:, :hidden].set(
        w1.astype(jnp.bfloat16))
    b1p = jnp.zeros((1, HIDDEN_PAD), jnp.float32).at[:, :hidden].set(
        b1.reshape(1, hidden).astype(jnp.float32))
    w2p = jnp.zeros((HIDDEN_PAD, d_out), jnp.bfloat16).at[:hidden, :].set(
        w2.astype(jnp.bfloat16))
    b2p = b2.reshape(1, d_out).astype(jnp.float32)
    return w1p, b1p, w2p, b2p


def example_model_forward(x, w1p, b1p, w2p, b2p, *, tb=2048):
    """Pallas implementation of ExampleModel.forward(x) (target=None path).

    x:   (B, 512)         bf16 preferred (f32 also works, just more DMA)
    w1p: (512, 128) bf16   b1p: (1, 128) f32   (prepared via prepare_params)
    w2p: (128, 10)  bf16   b2p: (1, 10)  f32
    returns prob: (B, 10) float32
    """
    B, d_in = x.shape
    d_out = w2p.shape[1]

    # Batch tile: multiple of 8, >=2 grid steps when possible (v7x megacore), capped
    # at tb. bf16 x at TB=2048 double-buffered is ~4 MiB + ~0.15 MiB weights: fits the
    # default scoped VMEM on every generation (v5e 16 MiB, v6e/v7x 32 MiB).
    half = -(-B // 2)                               # cdiv(B, 2)
    TB = min(tb, max(8, ((half + 7) // 8) * 8))
    grid = (pl.cdiv(B, TB),)

    flops = 2 * B * d_in * HIDDEN_PAD + 2 * B * HIDDEN_PAD * d_out
    bytes_accessed = (
        B * d_in * x.dtype.itemsize                 # stream x (bf16 -> half of f32)
        + B * d_out * 4                             # prob out
        + w1p.size * 2 + b1p.size * 4 + w2p.size * 2 + b2p.size * 4
    )

    return pl.pallas_call(
        mlp_softmax_kernel,
        out_shape=jax.ShapeDtypeStruct((B, d_out), jnp.float32),
        grid=grid,
        in_specs=[
            pl.BlockSpec((TB, d_in), lambda i: (i, 0)),            # x: tiled over batch
            pl.BlockSpec((d_in, HIDDEN_PAD), lambda i: (0, 0)),    # w1: VMEM-resident
            pl.BlockSpec((1, HIDDEN_PAD), lambda i: (0, 0)),       # b1: VMEM-resident
            pl.BlockSpec((HIDDEN_PAD, d_out), lambda i: (0, 0)),   # w2: VMEM-resident
            pl.BlockSpec((1, d_out), lambda i: (0, 0)),            # b2: VMEM-resident
        ],
        out_specs=pl.BlockSpec((TB, d_out), lambda i: (i, 0)),
        compiler_params=pltpu.CompilerParams(
            dimension_semantics=("parallel",),      # shard batch tiles across TCs
        ),
        cost_estimate=pl.CostEstimate(
            flops=flops,
            transcendentals=B * d_out,
            bytes_accessed=bytes_accessed,
        ),
    )(x, w1p, b1p, w2p, b2p)


def init_params(key):
    """Deterministic init mimicking nn.Linear's U(-1/sqrt(fan_in), 1/sqrt(fan_in))."""
    k1, k2, k3, k4 = jax.random.split(key, 4)
    bound1 = 1.0 / jnp.sqrt(512.0)
    bound2 = 1.0 / jnp.sqrt(100.0)
    w1 = jax.random.uniform(k1, (512, 100), jnp.float32, -bound1, bound1)
    b1 = jax.random.uniform(k2, (1, 100), jnp.float32, -bound1, bound1)
    w2 = jax.random.uniform(k3, (100, 10), jnp.float32, -bound2, bound2)
    b2 = jax.random.uniform(k4, (1, 10), jnp.float32, -bound2, bound2)
    return w1, b1, w2, b2


def reference_forward(x, w1, b1, w2, b2):
    h = jnp.maximum(x @ w1 + b1, 0.0)
    logits = jnp.maximum(h @ w2 + b2, 0.0)
    return jax.nn.softmax(logits, axis=1)


if __name__ == "__main__":
    key = jax.random.PRNGKey(0)
    kx, kp = jax.random.split(key)
    B = 8
    x = jax.random.normal(kx, (B, 512), jnp.float32)
    w1, b1, w2, b2 = init_params(kp)
    params = prepare_params(w1, b1, w2, b2)       # one-time pad + bf16 cast

    prob = example_model_forward(x.astype(jnp.bfloat16), *params)
    prob = jax.block_until_ready(prob)

    ref = reference_forward(x, w1, b1, w2, b2)
    assert prob.shape == (B, 10)
    assert jnp.allclose(jnp.sum(prob, axis=1), 1.0, atol=5e-3)     # approx reciprocal
    assert jnp.allclose(prob, ref, atol=2e-2, rtol=2e-2)           # bf16 matmul tolerance

    # Batch that exercises the ragged last block and a multi-step (2-TC) grid.
    B2 = 2000
    x2 = jax.random.normal(kx, (B2, 512), jnp.float32)
    prob2 = jax.block_until_ready(
        example_model_forward(x2.astype(jnp.bfloat16), *params))
    ref2 = reference_forward(x2, w1, b1, w2, b2)
    assert prob2.shape == (B2, 10)
    assert jnp.allclose(jnp.sum(prob2, axis=1), 1.0, atol=5e-3)
    assert jnp.allclose(prob2, ref2, atol=2e-2, rtol=2e-2)

    # TODO(synk): the target-supplied branch (F.cross_entropy loss) is not part of the
    # inference hot path and is left to plain JAX if ever needed.
    print("KERNEL_OK")
</pallas_src>

<mosaic_0001>
module attributes {stable_mosaic.version = 11 : i64} {
  func.func @mlp_softmax_kernel(%arg0: i32, %arg1: memref<8x512xbf16, #tpu.memory_space<vmem>>, %arg2: memref<512x128xbf16, #tpu.memory_space<vmem>>, %arg3: memref<1x128xf32, #tpu.memory_space<vmem>>, %arg4: memref<128x10xbf16, #tpu.memory_space<vmem>>, %arg5: memref<1x10xf32, #tpu.memory_space<vmem>>, %arg6: memref<8x10xf32, #tpu.memory_space<vmem>>) attributes {dimension_semantics = [#tpu.dimension_semantics<parallel>], iteration_bounds = array<i64: 1>, scalar_prefetch = 0 : i64, scratch_operands = 0 : i64, tpu.core_type = #tpu.core_type<tc>, window_params = [{transform_indices = @transform_0, window_bounds = array<i64: 8, 512>}, {pipeline_mode = #tpu.pipeline_mode<synchronous>, transform_indices = @transform_1, window_bounds = array<i64: 512, 128>}, {pipeline_mode = #tpu.pipeline_mode<synchronous>, transform_indices = @transform_2, window_bounds = array<i64: 1, 128>}, {pipeline_mode = #tpu.pipeline_mode<synchronous>, transform_indices = @transform_3, window_bounds = array<i64: 128, 10>}, {pipeline_mode = #tpu.pipeline_mode<synchronous>, transform_indices = @transform_4, window_bounds = array<i64: 1, 10>}, {transform_indices = @transform_5, window_bounds = array<i64: 8, 10>}]} {
    %c0 = arith.constant 0 : index
    %c0_0 = arith.constant 0 : index
    %0 = vector.load %arg1[%c0, %c0_0] : memref<8x512xbf16, #tpu.memory_space<vmem>>, vector<8x512xbf16>
    %c0_1 = arith.constant 0 : index
    %c0_2 = arith.constant 0 : index
    %1 = vector.load %arg2[%c0_1, %c0_2] : memref<512x128xbf16, #tpu.memory_space<vmem>>, vector<512x128xbf16>
    %cst = arith.constant dense<0.000000e+00> : vector<8x128xf32>
    %2 = tpu.matmul %0, %1, %cst {dimension_numbers = #tpu.dot_dimension_numbers<[1], [0], [0], [1], [0, 0, 1, 1], [], []>} : vector<8x512xbf16>, vector<512x128xbf16>, vector<8x128xf32> -> vector<8x128xf32>
    %c0_3 = arith.constant 0 : index
    %c0_4 = arith.constant 0 : index
    %3 = vector.load %arg3[%c0_3, %c0_4] : memref<1x128xf32, #tpu.memory_space<vmem>>, vector<1x128xf32>
    %4 = vector.broadcast %3 : vector<1x128xf32> to vector<8x128xf32>
    %5 = arith.addf %2, %4 : vector<8x128xf32>
    %cst_5 = arith.constant 0.000000e+00 : f32
    %6 = vector.broadcast %cst_5 : f32 to vector<8x128xf32>
    %7 = arith.maximumf %5, %6 : vector<8x128xf32>
    %8 = arith.truncf %7 : vector<8x128xf32> to vector<8x128xbf16>
    %c0_6 = arith.constant 0 : index
    %c0_7 = arith.constant 0 : index
    %9 = vector.load %arg4[%c0_6, %c0_7] : memref<128x10xbf16, #tpu.memory_space<vmem>>, vector<128x10xbf16>
    %cst_8 = arith.constant dense<0.000000e+00> : vector<8x10xf32>
    %10 = tpu.matmul %8, %9, %cst_8 {dimension_numbers = #tpu.dot_dimension_numbers<[1], [0], [0], [1], [0, 0, 1, 1], [], []>} : vector<8x128xbf16>, vector<128x10xbf16>, vector<8x10xf32> -> vector<8x10xf32>
    %c0_9 = arith.constant 0 : index
    %c0_10 = arith.constant 0 : index
    %11 = vector.load %arg5[%c0_9, %c0_10] : memref<1x10xf32, #tpu.memory_space<vmem>>, vector<1x10xf32>
    %12 = vector.broadcast %11 : vector<1x10xf32> to vector<8x10xf32>
    %13 = arith.addf %10, %12 : vector<8x10xf32>
    %cst_11 = arith.constant 0.000000e+00 : f32
    %14 = vector.broadcast %cst_11 : f32 to vector<8x10xf32>
    %15 = arith.maximumf %13, %14 : vector<8x10xf32>
    %cst_12 = arith.constant dense<0xFF800000> : vector<8xf32>
    %16 = vector.multi_reduction <maximumf>, %15, %cst_12 [1] : vector<8x10xf32> to vector<8xf32>
    %17 = vector.shape_cast %16 : vector<8xf32> to vector<8x1xf32>
    %18 = vector.broadcast %17 : vector<8x1xf32> to vector<8x10xf32>
    %19 = arith.subf %15, %18 : vector<8x10xf32>
    %20 = math.exp %19 : vector<8x10xf32>
    %cst_13 = arith.constant dense<0.000000e+00> : vector<8xf32>
    %21 = vector.multi_reduction <add>, %20, %cst_13 [1] : vector<8x10xf32> to vector<8xf32>
    %22 = vector.shape_cast %21 : vector<8xf32> to vector<8x1xf32>
    %23 = tpu.reciprocal %22 {approx = true} : vector<8x1xf32> -> vector<8x1xf32>
    %24 = vector.broadcast %23 : vector<8x1xf32> to vector<8x10xf32>
    %25 = arith.mulf %20, %24 : vector<8x10xf32>
    %c0_14 = arith.constant 0 : index
    %c0_15 = arith.constant 0 : index
    %26 = vector.load %arg6[%c0_14, %c0_15] : memref<8x10xf32, #tpu.memory_space<vmem>>, vector<8x10xf32>
    tpu.vector_store %arg6[%c0_14, %c0_15], %25 {strides = array<i32>} : memref<8x10xf32, #tpu.memory_space<vmem>>, vector<8x10xf32>,
    return
  }
  func.func @transform_0(%arg0: i32) -> (i32, i32) {
    %c0_i32 = arith.constant 0 : i32
    %c0_i32_0 = arith.constant 0 : i32
    return %arg0, %c0_i32 : i32, i32
  }
  func.func @transform_1(%arg0: i32) -> (i32, i32) {
    %c0_i32 = arith.constant 0 : i32
    %c0_i32_0 = arith.constant 0 : i32
    %c0_i32_1 = arith.constant 0 : i32
    return %c0_i32, %c0_i32_0 : i32, i32
  }
  func.func @transform_2(%arg0: i32) -> (i32, i32) {
    %c0_i32 = arith.constant 0 : i32
    %c0_i32_0 = arith.constant 0 : i32
    %c0_i32_1 = arith.constant 0 : i32
    return %c0_i32, %c0_i32_0 : i32, i32
  }
  func.func @transform_3(%arg0: i32) -> (i32, i32) {
    %c0_i32 = arith.constant 0 : i32
    %c0_i32_0 = arith.constant 0 : i32
    %c0_i32_1 = arith.constant 0 : i32
    return %c0_i32, %c0_i32_0 : i32, i32
  }
  func.func @transform_4(%arg0: i32) -> (i32, i32) {
    %c0_i32 = arith.constant 0 : i32
    %c0_i32_0 = arith.constant 0 : i32
    %c0_i32_1 = arith.constant 0 : i32
    return %c0_i32, %c0_i32_0 : i32, i32
  }
  func.func @transform_5(%arg0: i32) -> (i32, i32) {
    %c0_i32 = arith.constant 0 : i32
    %c0_i32_0 = arith.constant 0 : i32
    return %arg0, %c0_i32 : i32, i32
  }
}

</mosaic_0001>

<llo_original>
// kernel: tpu_custom_call.1
$region0: #{tpu_custom_call.1}
  #allocation0 [shape = 'u32[]', space=smem, size = 0x4, offset = 0x4, fixed_abs, tag = 'smem constant byte address 0x4 - core index']
  #allocation1 [shape = 'u32[144,128]{1,0:T(1,128)}', space=vmem, size = 0x12000, scoped, tag = 'internal scratch']
  %s0 = inlined_call_operand.vmem [shape: bf16[8,512], index: 0, kind: input, shape index: {}]
  %s1 = inlined_call_operand.hbm [shape: bf16[512,128], index: 1, kind: input, shape index: {}]
  %s2 = inlined_call_operand.vmem [shape: f32[1,128], index: 2, kind: input, shape index: {}]
  %s3 = inlined_call_operand.vmem [shape: bf16[128,10], index: 3, kind: input, shape index: {}]
  %s4 = inlined_call_operand.vmem [shape: f32[1,10], index: 4, kind: input, shape index: {}]
  %s5 = inlined_call_operand.hbm [shape: f32[8,10], index: 5, kind: output, shape index: {}]
  %s6 = sld [smem:[#allocation0]]
  $region34: #{tpu_custom_call.1} parent=0
    _
  %s8 = ssub.s32 1, %s6
  %s9 = scalar_select 0, %s8, %s6
  $region1: #{tpu_custom_call.1} parent=0
    #allocation2 [shape = 'u8[131072]{0}', space=vmem, size = 0x20000, scoped, tag = 'input window, operand 1, single buffered']
    #allocation3 [shape = 's32[1]{0}', space=sflag, size = 0x4, scoped, tag = 'scoped memory for tpu_custom_call.1']
    #allocation4 [shape = 's32[1]{0}', space=sflag, size = 0x4, scoped, tag = 'scoped memory for tpu_custom_call.1']
    #allocation5 [shape = 'u8[4096]{0}', space=vmem, size = 0x1000, scoped, tag = 'output window, operand 0, single buffered']
    %10 = vsyncpa [#allocation3], 0
    %11 = vsyncpa [#allocation4], 0
    // Predicated region
    $region2: #{tpu_custom_call.1} parent=1 // pred_check
      _
    $region3: #{tpu_custom_call.1} parent=1 // pred_check_branch
      %13 = sbr.rel (0) target = $region5
    $region4: #{tpu_custom_call.1} parent=1 // pred_region
      _
    $region5: #{tpu_custom_call.1} parent=1 // pred_fallthru
      _
    // Predicated region
    $region6: #{tpu_custom_call.1} parent=1 // pred_check
      _
    $region7: #{tpu_custom_call.1} parent=1 // pred_check_branch
      %15 = sbr.rel (0) target = $region9
    $region8: #{tpu_custom_call.1} parent=1 // pred_region
      %s17 = ssub.s32 4096, 4096
      %18 = vsyncadd [#allocation3], %s17
      %s19 = sshll.u32 [#allocation2], 4
      %s20 = int_to_ptr.vmem [resolvable:$true] %s19
      %25 = dma.hbm_to_vmem [thread:$0]  %s1, 4096, %s20, [#allocation3], 64, 64, 4
    $region9: #{tpu_custom_call.1} parent=1 // pred_fallthru
      _
    // Predicated region
    $region10: #{tpu_custom_call.1} parent=1 // pred_check
      _
    $region11: #{tpu_custom_call.1} parent=1 // pred_check_branch
      %27 = sbr.rel (0) target = $region13
    $region12: #{tpu_custom_call.1} parent=1 // pred_region
      _
    $region13: #{tpu_custom_call.1} parent=1 // pred_fallthru
      _
    // Predicated region
    $region14: #{tpu_custom_call.1} parent=1 // pred_check
      _
    $region15: #{tpu_custom_call.1} parent=1 // pred_check_branch
      %29 = sbr.rel (0) target = $region17
    $region16: #{tpu_custom_call.1} parent=1 // pred_region
      _
    $region17: #{tpu_custom_call.1} parent=1 // pred_fallthru
      _
    // Predicated region
    $region18: #{tpu_custom_call.1} parent=1 // pred_check
      _
    $region19: #{tpu_custom_call.1} parent=1 // pred_check_branch
      %31 = sbr.rel (0) target = $region21
    $region20: #{tpu_custom_call.1} parent=1 // pred_region
      _
    $region21: #{tpu_custom_call.1} parent=1 // pred_fallthru
      _
    // Predicated region
    $region22: #{tpu_custom_call.1} parent=1 // pred_check
      _
    $region23: #{tpu_custom_call.1} parent=1 // pred_check_branch
      %33 = sbr.rel (0) target = $region25
    $region24: #{tpu_custom_call.1} parent=1 // pred_region
      %34 = dma.done [#allocation3], 4096
    $region25: #{tpu_custom_call.1} parent=1 // pred_fallthru
      _
    %v36 = vld [vmem:[%s0] sm:$0xff]
    %v37 = vld [vmem:[%s0 + $0x8] sm:$0xff]
    %v38 = vld [vmem:[#allocation2] sm:$0xf]
    %v39 = vld [vmem:[#allocation2 + $0x4] sm:$0xf]
    %v40 = vld [vmem:[#allocation2 + $0x8] sm:$0xf]
    %v41 = vld [vmem:[#allocation2 + $0xc] sm:$0xf]
    %v42 = vld [vmem:[#allocation2 + $0x10] sm:$0xf]
    %v43 = vld [vmem:[#allocation2 + $0x14] sm:$0xf]
    %v44 = vld [vmem:[#allocation2 + $0x18] sm:$0xf]
    %v45 = vld [vmem:[#allocation2 + $0x1c] sm:$0xf]
    %v46 = vld [vmem:[#allocation2 + $0x20] sm:$0xf]
    %v47 = vld [vmem:[#allocation2 + $0x24] sm:$0xf]
    %v48 = vld [vmem:[#allocation2 + $0x28] sm:$0xf]
    %v49 = vld [vmem:[#allocation2 + $0x2c] sm:$0xf]
    %v50 = vld [vmem:[#allocation2 + $0x30] sm:$0xf]
    %v51 = vld [vmem:[#allocation2 + $0x34] sm:$0xf]
    %v52 = vld [vmem:[#allocation2 + $0x38] sm:$0xf]
    %v53 = vld [vmem:[#allocation2 + $0x3c] sm:$0xf]
    %v54 = vld [vmem:[#allocation2 + $0x40] sm:$0xf]
    %v55 = vld [vmem:[#allocation2 + $0x44] sm:$0xf]
    %v56 = vld [vmem:[#allocation2 + $0x48] sm:$0xf]
    %v57 = vld [vmem:[#allocation2 + $0x4c] sm:$0xf]
    %v58 = vld [vmem:[#allocation2 + $0x50] sm:$0xf]
    %v59 = vld [vmem:[#allocation2 + $0x54] sm:$0xf]
    %v60 = vld [vmem:[#allocation2 + $0x58] sm:$0xf]
    %v61 = vld [vmem:[#allocation2 + $0x5c] sm:$0xf]
    %v62 = vld [vmem:[#allocation2 + $0x60] sm:$0xf]
    %v63 = vld [vmem:[#allocation2 + $0x64] sm:$0xf]
    %v64 = vld [vmem:[#allocation2 + $0x68] sm:$0xf]
    %v65 = vld [vmem:[#allocation2 + $0x6c] sm:$0xf]
    %v66 = vld [vmem:[#allocation2 + $0x70] sm:$0xf]
    %v67 = vld [vmem:[#allocation2 + $0x74] sm:$0xf]
    %v68 = vld [vmem:[#allocation2 + $0x78] sm:$0xf]
    %v69 = vld [vmem:[#allocation2 + $0x7c] sm:$0xf]
    %v70 = vld [vmem:[#allocation2 + $0x80] sm:$0xf]
    %v71 = vld [vmem:[#allocation2 + $0x84] sm:$0xf]
    %v72 = vld [vmem:[#allocation2 + $0x88] sm:$0xf]
    %v73 = vld [vmem:[#allocation2 + $0x8c] sm:$0xf]
    %v74 = vld [vmem:[#allocation2 + $0x90] sm:$0xf]
    %v75 = vld [vmem:[#allocation2 + $0x94] sm:$0xf]
    %v76 = vld [vmem:[#allocation2 + $0x98] sm:$0xf]
    %v77 = vld [vmem:[#allocation2 + $0x9c] sm:$0xf]
    %v78 = vld [vmem:[#allocation2 + $0xa0] sm:$0xf]
    %v79 = vld [vmem:[#allocation2 + $0xa4] sm:$0xf]
    %v80 = vld [vmem:[#allocation2 + $0xa8] sm:$0xf]
    %v81 = vld [vmem:[#allocation2 + $0xac] sm:$0xf]
    %v82 = vld [vmem:[#allocation2 + $0xb0] sm:$0xf]
    %v83 = vld [vmem:[#allocation2 + $0xb4] sm:$0xf]
    %v84 = vld [vmem:[#allocation2 + $0xb8] sm:$0xf]
    %v85 = vld [vmem:[#allocation2 + $0xbc] sm:$0xf]
    %v86 = vld [vmem:[#allocation2 + $0xc0] sm:$0xf]
    %v87 = vld [vmem:[#allocation2 + $0xc4] sm:$0xf]
    %v88 = vld [vmem:[#allocation2 + $0xc8] sm:$0xf]
    %v89 = vld [vmem:[#allocation2 + $0xcc] sm:$0xf]
    %v90 = vld [vmem:[#allocation2 + $0xd0] sm:$0xf]
    %v91 = vld [vmem:[#allocation2 + $0xd4] sm:$0xf]
    %v92 = vld [vmem:[#allocation2 + $0xd8] sm:$0xf]
    %v93 = vld [vmem:[#allocation2 + $0xdc] sm:$0xf]
    %v94 = vld [vmem:[#allocation2 + $0xe0] sm:$0xf]
    %v95 = vld [vmem:[#allocation2 + $0xe4] sm:$0xf]
    %v96 = vld [vmem:[#allocation2 + $0xe8] sm:$0xf]
    %v97 = vld [vmem:[#allocation2 + $0xec] sm:$0xf]
    %v98 = vld [vmem:[#allocation2 + $0xf0] sm:$0xf]
    %v99 = vld [vmem:[#allocation2 + $0xf4] sm:$0xf]
    %v100 = vld [vmem:[#allocation2 + $0xf8] sm:$0xf]
    %v101 = vld [vmem:[#allocation2 + $0xfc] sm:$0xf]
    %v102 = vld [vmem:[%s2] sm:$0x1]
    %v104 = vlaneseq
    %v105 = vshrl.u32 %v104, 7
    %v106 = vsub.s32 0, %v105
    %v107 = vrot.slane %v102, %v106
    %v111 = vunpack.c.l.b16 %v36
    %v112 = vunpack.c.h.b16 %v36
    %v113 = vunpack.c.l.b16 %v37
    %v114 = vunpack.c.h.b16 %v37
    %v115 = vpack.c.b16 %v111, %v111
    %v116 = vpack.c.b16 %v112, %v112
    %v117 = vpack.c.b16 %v113, %v113
    %v118 = vpack.c.b16 %v114, %v114
    %v187 = vunpack.c.l.b16 %v38
    %v188 = vunpack.c.l.b16 %v39
    %v189 = vunpack.c.l.b16 %v40
    %v190 = vunpack.c.l.b16 %v41
    %v191 = vunpack.c.l.b16 %v42
    %v192 = vunpack.c.l.b16 %v43
    %v193 = vunpack.c.l.b16 %v44
    %v194 = vunpack.c.l.b16 %v45
    %v195 = vunpack.c.l.b16 %v46
    %v196 = vunpack.c.l.b16 %v47
    %v197 = vunpack.c.l.b16 %v48
    %v198 = vunpack.c.l.b16 %v49
    %v199 = vunpack.c.l.b16 %v50
    %v200 = vunpack.c.l.b16 %v51
    %v201 = vunpack.c.l.b16 %v52
    %v202 = vunpack.c.l.b16 %v53
    %v203 = vunpack.c.l.b16 %v54
    %v204 = vunpack.c.l.b16 %v55
    %v205 = vunpack.c.l.b16 %v56
    %v206 = vunpack.c.l.b16 %v57
    %v207 = vunpack.c.l.b16 %v58
    %v208 = vunpack.c.l.b16 %v59
    %v209 = vunpack.c.l.b16 %v60
    %v210 = vunpack.c.l.b16 %v61
    %v211 = vunpack.c.l.b16 %v62
    %v212 = vunpack.c.l.b16 %v63
    %v213 = vunpack.c.l.b16 %v64
    %v214 = vunpack.c.l.b16 %v65
    %v215 = vunpack.c.l.b16 %v66
    %v216 = vunpack.c.l.b16 %v67
    %v217 = vunpack.c.l.b16 %v68
    %v218 = vunpack.c.l.b16 %v69
    %v219 = vunpack.c.l.b16 %v70
    %v220 = vunpack.c.l.b16 %v71
    %v221 = vunpack.c.l.b16 %v72
    %v222 = vunpack.c.l.b16 %v73
    %v223 = vunpack.c.l.b16 %v74
    %v224 = vunpack.c.l.b16 %v75
    %v225 = vunpack.c.l.b16 %v76
    %v226 = vunpack.c.l.b16 %v77
    %v227 = vunpack.c.l.b16 %v78
    %v228 = vunpack.c.l.b16 %v79
    %v229 = vunpack.c.l.b16 %v80
    %v230 = vunpack.c.l.b16 %v81
    %v231 = vunpack.c.l.b16 %v82
    %v232 = vunpack.c.l.b16 %v83
    %v233 = vunpack.c.l.b16 %v84
    %v234 = vunpack.c.l.b16 %v85
    %v235 = vunpack.c.l.b16 %v86
    %v236 = vunpack.c.l.b16 %v87
    %v237 = vunpack.c.l.b16 %v88
    %v238 = vunpack.c.l.b16 %v89
    %v239 = vunpack.c.l.b16 %v90
    %v240 = vunpack.c.l.b16 %v91
    %v241 = vunpack.c.l.b16 %v92
    %v242 = vunpack.c.l.b16 %v93
    %v243 = vunpack.c.l.b16 %v94
    %v244 = vunpack.c.l.b16 %v95
    %v245 = vunpack.c.l.b16 %v96
    %v246 = vunpack.c.l.b16 %v97
    %v247 = vunpack.c.l.b16 %v98
    %v248 = vunpack.c.l.b16 %v99
    %v249 = vunpack.c.l.b16 %v100
    %v250 = vunpack.c.l.b16 %v101
    %v251 = vpack.c.b16 %v188, %v187
    %v252 = vpack.c.b16 %v190, %v189
    %v253 = vpack.c.b16 %v192, %v191
    %v254 = vpack.c.b16 %v194, %v193
    %v255 = vpack.c.b16 %v196, %v195
    %v256 = vpack.c.b16 %v198, %v197
    %v257 = vpack.c.b16 %v200, %v199
    %v258 = vpack.c.b16 %v202, %v201
    %v259 = vpack.c.b16 %v204, %v203
    %v260 = vpack.c.b16 %v206, %v205
    %v261 = vpack.c.b16 %v208, %v207
    %v262 = vpack.c.b16 %v210, %v209
    %v263 = vpack.c.b16 %v212, %v211
    %v264 = vpack.c.b16 %v214, %v213
    %v265 = vpack.c.b16 %v216, %v215
    %v266 = vpack.c.b16 %v218, %v217
    %v267 = vpack.c.b16 %v220, %v219
    %v268 = vpack.c.b16 %v222, %v221
    %v269 = vpack.c.b16 %v224, %v223
    %v270 = vpack.c.b16 %v226, %v225
    %v271 = vpack.c.b16 %v228, %v227
    %v272 = vpack.c.b16 %v230, %v229
    %v273 = vpack.c.b16 %v232, %v231
    %v274 = vpack.c.b16 %v234, %v233
    %v275 = vpack.c.b16 %v236, %v235
    %v276 = vpack.c.b16 %v238, %v237
    %v277 = vpack.c.b16 %v240, %v239
    %v278 = vpack.c.b16 %v242, %v241
    %v279 = vpack.c.b16 %v244, %v243
    %v280 = vpack.c.b16 %v246, %v245
    %v281 = vpack.c.b16 %v248, %v247
    %v282 = vpack.c.b16 %v250, %v249
    %315 = vmatprep.subr.bf16.mxu0 0
    %316 = vmatpush1.bf16.msra.mxu0 %v251
    %317 = vmatprep.subr.bf16.mxu0 0
    %318 = vmatpush1.bf16.msra.mxu0 %v252
    %319 = vmatprep.subr.bf16.mxu0 0
    %320 = vmatpush1.bf16.msra.mxu0 %v253
    %321 = vmatprep.subr.bf16.mxu0 0
    %322 = vmatpush1.bf16.msra.mxu0 %v254
    %323 = vmatprep.subr.bf16.mxu0 0
    %324 = vmatpush1.bf16.msra.mxu0 %v255
    %325 = vmatprep.subr.bf16.mxu0 0
    %326 = vmatpush1.bf16.msra.mxu0 %v256
    %327 = vmatprep.subr.bf16.mxu0 0
    %328 = vmatpush1.bf16.msra.mxu0 %v257
    %329 = vmatprep.subr.bf16.mxu0 0
    %330 = vmatpush1.bf16.msra.mxu0 %v258
    %331 = vmatprep.subr.bf16.mxu0 0
    %332 = vmatpush1.bf16.msra.mxu0 %v259
    %333 = vmatprep.subr.bf16.mxu0 0
    %334 = vmatpush1.bf16.msra.mxu0 %v260
    %335 = vmatprep.subr.bf16.mxu0 0
    %336 = vmatpush1.bf16.msra.mxu0 %v261
    %337 = vmatprep.subr.bf16.mxu0 0
    %338 = vmatpush1.bf16.msra.mxu0 %v262
    %339 = vmatprep.subr.bf16.mxu0 0
    %340 = vmatpush1.bf16.msra.mxu0 %v263
    %341 = vmatprep.subr.bf16.mxu0 0
    %342 = vmatpush1.bf16.msra.mxu0 %v264
    %343 = vmatprep.subr.bf16.mxu0 0
    %344 = vmatpush1.bf16.msra.mxu0 %v265
    %345 = vmatprep.subr.bf16.mxu0 0
    %346 = vmatpush1.bf16.msra.mxu0 %v266
    %347 = vmatprep.mubr.bf16.mxu0 %v116
    %348 = vmatmul.mubr.bf16.gmra.mrb[0].mxu0 %v115
    %v349 = vpop.f32.mrb[0].mxu0
    %v350 = vadd.f32 %v107, %v349
    %v351 = vpop.f32.mrb[0].mxu0
    %v352 = vpop.f32.mrb[0].mxu0
    %v353 = vpop.f32.mrb[0].mxu0
    %354 = vdwg.mxu0
    %355 = vmatprep.subr.bf16.mxu0 0
    %356 = vmatpush1.bf16.msra.mxu0 %v267
    %357 = vmatprep.subr.bf16.mxu0 0
    %358 = vmatpush1.bf16.msra.mxu0 %v268
    %359 = vmatprep.subr.bf16.mxu0 0
    %360 = vmatpush1.bf16.msra.mxu0 %v269
    %361 = vmatprep.subr.bf16.mxu0 0
    %362 = vmatpush1.bf16.msra.mxu0 %v270
    %363 = vmatprep.subr.bf16.mxu0 0
    %364 = vmatpush1.bf16.msra.mxu0 %v271
    %365 = vmatprep.subr.bf16.mxu0 0
    %366 = vmatpush1.bf16.msra.mxu0 %v272
    %367 = vmatprep.subr.bf16.mxu0 0
    %368 = vmatpush1.bf16.msra.mxu0 %v273
    %369 = vmatprep.subr.bf16.mxu0 0
    %370 = vmatpush1.bf16.msra.mxu0 %v274
    %371 = vmatprep.subr.bf16.mxu0 0
    %372 = vmatpush1.bf16.msra.mxu0 %v275
    %373 = vmatprep.subr.bf16.mxu0 0
    %374 = vmatpush1.bf16.msra.mxu0 %v276
    %375 = vmatprep.subr.bf16.mxu0 0
    %376 = vmatpush1.bf16.msra.mxu0 %v277
    %377 = vmatprep.subr.bf16.mxu0 0
    %378 = vmatpush1.bf16.msra.mxu0 %v278
    %379 = vmatprep.subr.bf16.mxu0 0
    %380 = vmatpush1.bf16.msra.mxu0 %v279
    %381 = vmatprep.subr.bf16.mxu0 0
    %382 = vmatpush1.bf16.msra.mxu0 %v280
    %383 = vmatprep.subr.bf16.mxu0 0
    %384 = vmatpush1.bf16.msra.mxu0 %v281
    %385 = vmatprep.subr.bf16.mxu0 0
    %386 = vmatpush1.bf16.msra.mxu0 %v282
    %387 = vmatprep.mubr.bf16.mxu0 %v118
    %388 = vmatmul.mubr.bf16.gmra.mrb[0].mxu0 %v117
    %v389 = vpop.f32.mrb[0].mxu0
    %v390 = vadd.f32 %v350, %v389
    %v391 = vpop.f32.mrb[0].mxu0
    %v392 = vpop.f32.mrb[0].mxu0
    %v393 = vpop.f32.mrb[0].mxu0
    %394 = vdwg.mxu0
    %v395 = vmax.f32 %v390, 0.0
    %v396 = vpack.c.bf16 %v395, %v395
    %v397 = vld [vmem:[%s3] sm:$0xf]
    %v398 = vld [vmem:[%s3 + $0x4] sm:$0xf]
    %v399 = vld [vmem:[%s3 + $0x8] sm:$0xf]
    %v400 = vld [vmem:[%s3 + $0xc] sm:$0xf]
    %v401 = vld [vmem:[%s3 + $0x10] sm:$0xf]
    %v402 = vld [vmem:[%s3 + $0x14] sm:$0xf]
    %v403 = vld [vmem:[%s3 + $0x18] sm:$0xf]
    %v404 = vld [vmem:[%s3 + $0x1c] sm:$0xf]
    %v405 = vld [vmem:[%s3 + $0x20] sm:$0xf]
    %v406 = vld [vmem:[%s3 + $0x24] sm:$0xf]
    %v407 = vld [vmem:[%s3 + $0x28] sm:$0xf]
    %v408 = vld [vmem:[%s3 + $0x2c] sm:$0xf]
    %v409 = vld [vmem:[%s3 + $0x30] sm:$0xf]
    %v410 = vld [vmem:[%s3 + $0x34] sm:$0xf]
    %v411 = vld [vmem:[%s3 + $0x38] sm:$0xf]
    %v412 = vld [vmem:[%s3 + $0x3c] sm:$0xf]
    %v413 = vld [vmem:[%s4] sm:$0x1]
    %v415 = vlaneseq
    %v416 = vshrl.u32 %v415, 7
    %v417 = vsub.s32 0, %v416
    %v418 = vrot.slane %v413, %v417
    %v436 = vunpack.c.l.b16 %v397
    %v437 = vunpack.c.l.b16 %v398
    %v438 = vunpack.c.l.b16 %v399
    %v439 = vunpack.c.l.b16 %v400
    %v440 = vunpack.c.l.b16 %v401
    %v441 = vunpack.c.l.b16 %v402
    %v442 = vunpack.c.l.b16 %v403
    %v443 = vunpack.c.l.b16 %v404
    %v444 = vunpack.c.l.b16 %v405
    %v445 = vunpack.c.l.b16 %v406
    %v446 = vunpack.c.l.b16 %v407
    %v447 = vunpack.c.l.b16 %v408
    %v448 = vunpack.c.l.b16 %v409
    %v449 = vunpack.c.l.b16 %v410
    %v450 = vunpack.c.l.b16 %v411
    %v451 = vunpack.c.l.b16 %v412
    %v452 = vpack.c.b16 %v437, %v436
    %v453 = vpack.c.b16 %v439, %v438
    %v454 = vpack.c.b16 %v441, %v440
    %v455 = vpack.c.b16 %v443, %v442
    %v456 = vpack.c.b16 %v445, %v444
    %v457 = vpack.c.b16 %v447, %v446
    %v458 = vpack.c.b16 %v449, %v448
    %v459 = vpack.c.b16 %v451, %v450
    %468 = vmatprep.subr.bf16.mxu0 0
    %469 = vmatpush1.bf16.msra.mxu0 %v452
    %470 = vmatprep.subr.bf16.mxu0 0
    %471 = vmatpush1.bf16.msra.mxu0 %v453
    %472 = vmatprep.subr.bf16.mxu0 0
    %473 = vmatpush1.bf16.msra.mxu0 %v454
    %474 = vmatprep.subr.bf16.mxu0 0
    %475 = vmatpush1.bf16.msra.mxu0 %v455
    %476 = vmatprep.subr.bf16.mxu0 0
    %477 = vmatpush1.bf16.msra.mxu0 %v456
    %478 = vmatprep.subr.bf16.mxu0 0
    %479 = vmatpush1.bf16.msra.mxu0 %v457
    %480 = vmatprep.subr.bf16.mxu0 0
    %481 = vmatpush1.bf16.msra.mxu0 %v458
    %482 = vmatprep.subr.bf16.mxu0 0
    %483 = vmatpush1.bf16.msra.mxu0 %v459
    %484 = vmatprep.subr.bf16.mxu0 0
    %485 = vmatpush1.bf16.msra.mxu0 0
    %486 = vmatprep.subr.bf16.mxu0 0
    %487 = vmatpush1.bf16.msra.mxu0 0
    %488 = vmatprep.subr.bf16.mxu0 0
    %489 = vmatpush1.bf16.msra.mxu0 0
    %490 = vmatprep.subr.bf16.mxu0 0
    %491 = vmatpush1.bf16.msra.mxu0 0
    %492 = vmatprep.subr.bf16.mxu0 0
    %493 = vmatpush1.bf16.msra.mxu0 0
    %494 = vmatprep.subr.bf16.mxu0 0
    %495 = vmatpush1.bf16.msra.mxu0 0
    %496 = vmatprep.subr.bf16.mxu0 0
    %497 = vmatpush1.bf16.msra.mxu0 0
    %498 = vmatprep.subr.bf16.mxu0 0
    %499 = vmatpush1.bf16.msra.mxu0 0
    %500 = vmatprep.mubr.bf16.mxu0 0
    %501 = vmatmul.mubr.bf16.gmra.mrb[0].mxu0 %v396
    %v502 = vpop.f32.mrb[0].mxu0
    %v503 = vadd.f32 %v418, %v502
    %v504 = vpop.f32.mrb[0].mxu0
    %v505 = vpop.f32.mrb[0].mxu0
    %v506 = vpop.f32.mrb[0].mxu0
    %507 = vdwg.mxu0
    %v508 = vmax.f32 %v503, 0.0
    %vm509 = vcmask 80896
    %v510 = vsel %vm509, %v508, -inf
    %511 = vmax.xlane.f32.xlu0 %v510
    %v512 = vpop.xlane.xlu0 %511
    %v513 = vsub.f32 %v508, %v512
    %v514 = vmul.f32 %v513, 1.442695
    %v515 = vpow.pop %v514
    %v516 = vsel %vm509, %v515, 0.0
    %517 = vadd.xlane.f32.xlu0 %v516
    %v518 = vpop.xlane.xlu0 %517
    %v519 = vrcp.pop %v518
    %v520 = vmul.f32 %v515, %v519
    %521 = vst.msk [vmem:[#allocation5] sm:$0xff] %vm509, %v520
    // Predicated region
    $region26: #{tpu_custom_call.1} parent=1 // pred_check
      _
    $region27: #{tpu_custom_call.1} parent=1 // pred_check_branch
      %523 = sbr.rel (0) target = $region29
    $region28: #{tpu_custom_call.1} parent=1 // pred_region
      %s525 = ssub.s32 128, 128
      %526 = vsyncadd [#allocation4], %s525
      %s528 = sshll.u32 [#allocation5], 4
      %s529 = int_to_ptr.vmem [resolvable:$true] %s528
      %531 = dma.vmem_to_hbm [thread:$0]  %s529, 128, %s5, [#allocation4]
    $region29: #{tpu_custom_call.1} parent=1 // pred_fallthru
      _
    // Predicated region
    $region30: #{tpu_custom_call.1} parent=1 // pred_check
      _
    $region31: #{tpu_custom_call.1} parent=1 // pred_check_branch
      %533 = sbr.rel (0) target = $region33
    $region32: #{tpu_custom_call.1} parent=1 // pred_region
      %534 = dma.done [#allocation4], 128
    $region33: #{tpu_custom_call.1} parent=1 // pred_fallthru
      _
    %535 = vsyncpa [#allocation3], 1
    %536 = vsyncpa [#allocation4], 1

</llo_original>
